<compile_context>
chip_gen: v7x
topology: tpu7x:2x2x1
jax: 0.10.0
libtpu: 0.0.40
codegen_flags: <defaults>
</compile_context>

<pallas_src>
import functools

import jax
import jax.numpy as jnp
from jax import lax
from jax.experimental import pallas as pl
from jax.experimental.pallas import tpu as pltpu


def _grouped_conv_l1_kernel(x_ref, w_ref, o_ref):
    """x_ref: (1, groups, cig, tile_hw) input tile (spatial on lanes),
    w_ref: (groups, cog, cig) per-group 1x1 conv weights (VMEM-resident),
    o_ref: (1, 1, 1, 1) partial sum of |x - conv(x)| for this (image, tile)."""
    x = x_ref[0]                       # (groups, cig, tile_hw)
    w = w_ref[...]                     # (groups, cog, cig), cog == cig
    # Grouped 1x1 conv for this (image, spatial tile): per-group MXU matmul.
    y = jnp.einsum("gij,gjt->git", w, x, preferred_element_type=jnp.float32)
    d = jnp.abs(x.astype(jnp.float32) - y)           # (groups, cig, tile_hw)
    # Leading-axis reduce is pure VPU adds; cross-lane reduce only on one slab.
    ps = jnp.sum(d, axis=0)                          # (cig, tile_hw)
    o_ref[...] = jnp.sum(ps, axis=(0, 1), keepdims=True).reshape(1, 1, 1, 1)


def _pick_tile_hw(hw: int, c: int) -> int:
    """Largest spatial tile (multiple of 128, dividing hw) under ~2 MiB payload."""
    budget_elems = (2 * 1024 * 1024) // 4            # ~2 MiB of f32 per x block
    max_tile = max(128, (budget_elems // max(c, 1)) // 128 * 128)
    if hw <= max_tile:
        return hw                                    # full spatial extent per block
    for t in range(max_tile, 127, -128):
        if hw % t == 0:
            return t
    # TODO(synk): ragged spatial tiling for hw with no 128-multiple divisor.
    return hw                                        # fallback: whole row (legal block)


@functools.partial(jax.jit, static_argnames=("groups",))
def grouped_conv_l1_loss(x_nchw, weight, *, groups):
    """x_nchw: [N, C, H, W]. weight: [C_out, C_in//groups, 1, 1] (grouped 1x1 conv).

    Returns scalar mean(|x - conv(x)|), matching the PyTorch module forward.
    """
    n, c_in, h, w = x_nchw.shape
    c_out, cig_w, kh, kw = weight.shape
    assert (kh, kw) == (1, 1), "x - conv(x) semantics require a 1x1 conv"
    assert c_out == c_in, "out_channels must equal in_channels for x - conv(x)"
    assert c_in % groups == 0 and c_out % groups == 0
    cig = c_in // groups
    cog = c_out // groups
    assert cig_w == cig
    hw = h * w

    tile_hw = _pick_tile_hw(hw, c_in)
    num_t = hw // tile_hw

    # NCHW is already [N, C, H*W] with spatial last: pure reshape, no copy.
    x4 = x_nchw.reshape(n, groups, cig, hw)
    # Per-group weights (groups, cog, cig); no dense block-diagonal matrix.
    w_all = weight[:, :, 0, 0].reshape(groups, cog, cig).astype(x_nchw.dtype)

    partials = pl.pallas_call(
        _grouped_conv_l1_kernel,
        out_shape=jax.ShapeDtypeStruct((n, num_t, 1, 1), jnp.float32),
        grid_spec=pltpu.PrefetchScalarGridSpec(
            num_scalar_prefetch=0,
            grid=(n, num_t),
            in_specs=[
                pl.BlockSpec((1, groups, cig, tile_hw),
                             lambda ni, ti: (ni, 0, 0, ti)),
                # Constant index_map -> weight DMA'd once, stays VMEM-resident.
                pl.BlockSpec((groups, cog, cig),
                             lambda ni, ti: (0, 0, 0)),
            ],
            out_specs=pl.BlockSpec((1, 1, 1, 1),
                                   lambda ni, ti: (ni, ti, 0, 0)),
        ),
        compiler_params=pltpu.CompilerParams(
            # Every grid step writes its own output block -> fully parallel
            # (megacore-shardable on v7x); no reduction axis in the grid.
            dimension_semantics=("parallel", "parallel"),
            vmem_limit_bytes=32 * 1024 * 1024),
    )(x4, w_all)

    numel = n * c_in * h * w
    total = jnp.sum(partials)          # tiny (n * num_t elements), done by XLA
    return (total / jnp.float32(numel)).astype(jnp.float32)


def _reference_loss(x_nchw, weight, groups):
    """Pure-JAX reference (lax grouped conv) for verification."""
    out = lax.conv_general_dilated(
        x_nchw, weight, window_strides=(1, 1), padding="VALID",
        dimension_numbers=("NCHW", "OIHW", "NCHW"),
        feature_group_count=groups)
    return jnp.mean(jnp.abs(x_nchw - out))


if __name__ == "__main__":
    # Module config: in_channels=16, out_channels=16, kernel_size=1, groups=2, bias=False
    N, C, H, W = 2, 16, 16, 16
    GROUPS = 2
    KSIZE = 1

    key = jax.random.PRNGKey(0)
    kx, kw = jax.random.split(key)
    x = jax.random.normal(kx, (N, C, H, W), dtype=jnp.float32)
    # Conv weight, shape (out_channels, in_channels//groups, k, k),
    # scaled like kaiming-uniform bound 1/sqrt(fan_in).
    fan_in = (C // GROUPS) * KSIZE * KSIZE
    bound = 1.0 / (fan_in ** 0.5)
    weight = jax.random.uniform(
        kw, (C, C // GROUPS, KSIZE, KSIZE), dtype=jnp.float32,
        minval=-bound, maxval=bound)

    loss = grouped_conv_l1_loss(x, weight, groups=GROUPS)
    loss = jax.block_until_ready(loss)

    ref = jax.block_until_ready(_reference_loss(x, weight, GROUPS))
    assert jnp.allclose(loss, ref, rtol=1e-5, atol=1e-5), (loss, ref)

    print("KERNEL_OK")
</pallas_src>

<mosaic_0001>
module attributes {stable_mosaic.version = 11 : i64} {
  func.func @_grouped_conv_l1_kernel(%arg0: i32, %arg1: i32, %arg2: memref<1x2x8x256xf32, #tpu.memory_space<vmem>>, %arg3: memref<2x8x8xf32, #tpu.memory_space<vmem>>, %arg4: memref<1x1x1x1xf32, #tpu.memory_space<vmem>>) attributes {dimension_semantics = [#tpu.dimension_semantics<parallel>, #tpu.dimension_semantics<parallel>], iteration_bounds = array<i64: 2, 1>, scalar_prefetch = 0 : i64, scratch_operands = 0 : i64, tpu.core_type = #tpu.core_type<tc>, window_params = [{transform_indices = @transform_0, window_bounds = array<i64: 1, 2, 8, 256>}, {pipeline_mode = #tpu.pipeline_mode<synchronous>, transform_indices = @transform_1, window_bounds = array<i64: 2, 8, 8>}, {transform_indices = @transform_2, window_bounds = array<i64: 1, 1, 1, 1>}]} {
    %c0 = arith.constant 0 : index
    %c0_0 = arith.constant 0 : index
    %c0_1 = arith.constant 0 : index
    %c0_2 = arith.constant 0 : index
    %0 = vector.load %arg2[%c0, %c0_0, %c0_1, %c0_2] : memref<1x2x8x256xf32, #tpu.memory_space<vmem>>, vector<1x2x8x256xf32>
    %1 = vector.shape_cast %0 : vector<1x2x8x256xf32> to vector<2x8x256xf32>
    %c0_3 = arith.constant 0 : index
    %c0_4 = arith.constant 0 : index
    %c0_5 = arith.constant 0 : index
    %2 = vector.load %arg3[%c0_3, %c0_4, %c0_5] : memref<2x8x8xf32, #tpu.memory_space<vmem>>, vector<2x8x8xf32>
    "tpu.trace_start"() <{level = 10 : i32, message = "gij,gjt->git"}> : () -> ()
    %cst = arith.constant dense<0.000000e+00> : vector<2x8x256xf32>
    %3 = tpu.matmul %2, %1, %cst {dimension_numbers = #tpu.dot_dimension_numbers<[2], [1], [1], [2], [0, 0, 0, 1, 1, 2], [0], [0]>} : vector<2x8x8xf32>, vector<2x8x256xf32>, vector<2x8x256xf32> -> vector<2x8x256xf32>
    "tpu.trace_stop"() : () -> ()
    %4 = arith.subf %1, %3 : vector<2x8x256xf32>
    %5 = math.absf %4 : vector<2x8x256xf32>
    %cst_6 = arith.constant dense<0.000000e+00> : vector<8x256xf32>
    %6 = vector.multi_reduction <add>, %5, %cst_6 [0] : vector<2x8x256xf32> to vector<8x256xf32>
    %7 = vector.shape_cast %6 : vector<8x256xf32> to vector<1x8x256xf32>
    %cst_7 = arith.constant dense<0.000000e+00> : vector<1xf32>
    %8 = vector.multi_reduction <add>, %7, %cst_7 [1, 2] : vector<1x8x256xf32> to vector<1xf32>
    %9 = vector.shape_cast %8 : vector<1xf32> to vector<1x1x1xf32>
    %10 = vector.extract %9[0, 0, 0] : f32 from vector<1x1x1xf32>
    %11 = vector.broadcast %10 : f32 to vector<1x1xf32>
    %12 = vector.shape_cast %11 : vector<1x1xf32> to vector<1x1x1x1xf32>
    %c0_8 = arith.constant 0 : index
    %c0_9 = arith.constant 0 : index
    %c0_10 = arith.constant 0 : index
    %c0_11 = arith.constant 0 : index
    %13 = vector.load %arg4[%c0_8, %c0_9, %c0_10, %c0_11] : memref<1x1x1x1xf32, #tpu.memory_space<vmem>>, vector<1x1x1x1xf32>
    tpu.vector_store %arg4[%c0_8, %c0_9, %c0_10, %c0_11], %12 {strides = array<i32>} : memref<1x1x1x1xf32, #tpu.memory_space<vmem>>, vector<1x1x1x1xf32>,
    return
  }
  func.func @transform_0(%arg0: i32, %arg1: i32) -> (i32, i32, i32, i32) {
    %c0_i32 = arith.constant 0 : i32
    %c0_i32_0 = arith.constant 0 : i32
    %c0_i32_1 = arith.constant 0 : i32
    return %arg0, %c0_i32, %c0_i32_0, %arg1 : i32, i32, i32, i32
  }
  func.func @transform_1(%arg0: i32, %arg1: i32) -> (i32, i32, i32) {
    %c0_i32 = arith.constant 0 : i32
    %c0_i32_0 = arith.constant 0 : i32
    %c0_i32_1 = arith.constant 0 : i32
    %c0_i32_2 = arith.constant 0 : i32
    return %c0_i32, %c0_i32_0, %c0_i32_1 : i32, i32, i32
  }
  func.func @transform_2(%arg0: i32, %arg1: i32) -> (i32, i32, i32, i32) {
    %c0_i32 = arith.constant 0 : i32
    %c0_i32_0 = arith.constant 0 : i32
    %c0_i32_1 = arith.constant 0 : i32
    return %arg0, %arg1, %c0_i32, %c0_i32_0 : i32, i32, i32, i32
  }
}

</mosaic_0001>

<llo_original>
// kernel: grouped_conv_l1_loss.1
$region0: #{grouped_conv_l1_loss.1}
  #allocation0 [shape = 'u32[]', space=smem, size = 0x4, offset = 0x4, fixed_abs, tag = 'smem constant byte address 0x4 - core index']
  #allocation1 [shape = 'u32[144,128]{1,0:T(1,128)}', space=vmem, size = 0x12000, scoped, tag = 'internal scratch']
  %s0 = inlined_call_operand.vmem [shape: f32[2,2,8,256], index: 0, kind: input, shape index: {}]
  %s1 = inlined_call_operand.vmem [shape: f32[2,8,8], index: 1, kind: input, shape index: {}]
  %s2 = inlined_call_operand.vmem [shape: f32[2,1,1,1], index: 2, kind: output, shape index: {}]
  %s3 = sld [smem:[#allocation0]]
  $region41: #{grouped_conv_l1_loss.1} parent=0
    _
  %s5 = ssub.s32 1, %s3
  %s6 = scalar_select 0, %s5, %s3
  loop: start=0, step=1, limit=4
  $region2: #{grouped_conv_l1_loss.1} parent=0 // loop_pre_header
    _
  $region3: #{grouped_conv_l1_loss.1} parent=0 // loop_header
    %s8 = sphi 0, %s12
    %p9 = scmp.ge.s32.totalorder %s8, 4
    %s15 = sphi 0, %s27
    %s16 = sphi 0, %s23
    %s17 = sphi 0, %s15
    %s18 = sphi 0, %s16
    %s19 = sphi 0, %s17
    %s20 = sphi 0, %s18
    %s32 = sphi 0, %s34
    %s35 = sphi 0, %s32
    %s36 = sphi 0, %s35
    %s52 = sphi 0, %s36
    %s56 = sphi 0, %s56
    %s58 = sphi 0, %s56
    %s59 = sphi 0, %s58
    %s73 = sphi 0, %s59
    %s81 = sphi 0, %s83
    %s84 = sphi 0, %s81
    %s85 = sphi 0, %s84
    %s101 = sphi 0, %s85
  $region4: #{grouped_conv_l1_loss.1} parent=0 // loop_header_branch
    %11 = sbr.rel (%p9) target = $region8
  $region5: #{grouped_conv_l1_loss.1} parent=0 // loop_body
    %s13 = ssub.s32 %s8, 1
    %s14 = ssub.s32 %s8, 2
    %s21 = sadd.s32 1, %s16
    %p22 = scmp.ge.s32.totalorder %s21, 1
    %s23 = scalar_select %p22, 0, %s21
    %s24 = sadd.s32 1, %s15
    %s25 = scalar_select %p22, %s24, %s15
    %p26 = scmp.ge.s32.totalorder %s25, 2
    %s27 = scalar_select %p26, 0, %s25
    %s28 = ssub.s32 %s15, %s27
    %s29 = ssub.s32 %s16, %s23
    %s30 = sor.u32 %s28, %s29
    %p31 = scmp.eq.s32.totalorder %s30, 0
    %s33 = sadd.s32 %s32, 1
    %s34 = scalar_select %p31, %s32, %s33
    %p37 = pneg %p31
    %p38 = scmp.eq.s32.totalorder %s8, 1
    %p39 = por %p37, %p38
    %p40 = scmp.ne.s32.totalorder %s32, %s35
    %p41 = scmp.eq.s32.totalorder %s8, 0
    %p42 = por %p40, %p41
    %p43 = scmp.ne.s32.totalorder %s32, %s35
    %p44 = scmp.eq.s32.totalorder %s13, 1
    %p45 = por %p43, %p44
    %p46 = scmp.ne.s32.totalorder %s35, %s36
    %p47 = scmp.eq.s32.totalorder %s13, 0
    %p48 = por %p46, %p47
    %p49 = scmp.ne.s32.totalorder %s35, %s36
    %p50 = scmp.eq.s32.totalorder %s14, 1
    %p51 = por %p49, %p50
    %p53 = scmp.ne.s32.totalorder %s36, %s52
    %p54 = scmp.eq.s32.totalorder %s14, 0
    %p55 = por %p53, %p54
    %s57 = sadd.s32 %s56, 1
    %p60 = scmp.eq.s32.totalorder %s8, 1
    %p61 = scmp.ne.s32.totalorder %s56, %s58
    %p62 = scmp.eq.s32.totalorder %s8, 0
    %p63 = por %p61, %p62
    %p64 = scmp.ne.s32.totalorder %s56, %s58
    %p65 = scmp.eq.s32.totalorder %s13, 1
    %p66 = por %p64, %p65
    %p67 = scmp.ne.s32.totalorder %s58, %s59
    %p68 = scmp.eq.s32.totalorder %s13, 0
    %p69 = por %p67, %p68
    %p70 = scmp.ne.s32.totalorder %s58, %s59
    %p71 = scmp.eq.s32.totalorder %s14, 1
    %p72 = por %p70, %p71
    %p74 = scmp.ne.s32.totalorder %s59, %s73
    %p75 = scmp.eq.s32.totalorder %s14, 0
    %p76 = por %p74, %p75
    %s77 = ssub.s32 %s15, %s27
    %s78 = ssub.s32 %s16, %s23
    %s79 = sor.u32 %s77, %s78
    %p80 = scmp.eq.s32.totalorder %s79, 0
    %s82 = sadd.s32 %s81, 1
    %s83 = scalar_select %p80, %s81, %s82
    %p86 = pneg %p80
    %p87 = scmp.eq.s32.totalorder %s8, 1
    %p88 = por %p86, %p87
    %p89 = scmp.ne.s32.totalorder %s81, %s84
    %p90 = scmp.eq.s32.totalorder %s8, 0
    %p91 = por %p89, %p90
    %p92 = scmp.ne.s32.totalorder %s81, %s84
    %p93 = scmp.eq.s32.totalorder %s13, 1
    %p94 = por %p92, %p93
    %p95 = scmp.ne.s32.totalorder %s84, %s85
    %p96 = scmp.eq.s32.totalorder %s13, 0
    %p97 = por %p95, %p96
    %p98 = scmp.ne.s32.totalorder %s84, %s85
    %p99 = scmp.eq.s32.totalorder %s14, 1
    %p100 = por %p98, %p99
    %p102 = scmp.ne.s32.totalorder %s85, %s101
    %p103 = scmp.eq.s32.totalorder %s14, 0
    %p104 = por %p102, %p103
    %p105 = scmp.le.s32.totalorder 1, %s8
    %p106 = scmp.lt.s32.totalorder %s8, 3
    %p107 = pnand %p105, %p106
    %p108 = pneg %p107
    // Predicated region
    $region9: #{grouped_conv_l1_loss.1} parent=5 // pred_check
      _
    $region10: #{grouped_conv_l1_loss.1} parent=5 // pred_check_branch
      %110 = sbr.rel (%p107) target = $region12
    $region11: #{grouped_conv_l1_loss.1} parent=5 // pred_region
      %s111 = ssub.s32 %s8, 1
      // Predicated region
      $region13: #{grouped_conv_l1_loss.1} parent=11 // pred_check
        %p112 = pneg %p69
      $region14: #{grouped_conv_l1_loss.1} parent=11 // pred_check_branch
        %114 = sbr.rel (%p112) target = $region16
      $region15: #{grouped_conv_l1_loss.1} parent=11 // pred_region
        _
      $region16: #{grouped_conv_l1_loss.1} parent=11 // pred_fallthru
        _
    $region12: #{grouped_conv_l1_loss.1} parent=5 // pred_fallthru
      _
    %p115 = scmp.lt.s32.totalorder %s8, 2
    // Predicated region
    $region17: #{grouped_conv_l1_loss.1} parent=5 // pred_check
      %p116 = pneg %p115
    $region18: #{grouped_conv_l1_loss.1} parent=5 // pred_check_branch
      %118 = sbr.rel (%p116) target = $region20
    $region19: #{grouped_conv_l1_loss.1} parent=5 // pred_region
      // Predicated region
      $region21: #{grouped_conv_l1_loss.1} parent=19 // pred_check
        %p119 = pneg %p42
      $region22: #{grouped_conv_l1_loss.1} parent=19 // pred_check_branch
        %121 = sbr.rel (%p119) target = $region24
      $region23: #{grouped_conv_l1_loss.1} parent=19 // pred_region
        %s122 = smul.u32 2, %s16
        %p123 = scmp.lt.s32.totalorder %s15, 1
        %s124 = scalar_select %p123, %s15, 1
        %p125 = scmp.lt.s32.totalorder %s122, 1
        %s126 = scalar_select %p125, %s122, 1
        %s127 = smul.addr %s124, 4
        %s128 = sadd.s32 %s126, %s127
        %s129 = smul.addr %s128, 8
        %s130 = scalar_lea.vmem %s0, %s129
        %s131 = smul.u32 2, %s16
      $region24: #{grouped_conv_l1_loss.1} parent=19 // pred_fallthru
        _
    $region20: #{grouped_conv_l1_loss.1} parent=5 // pred_fallthru
      _
    %p132 = scmp.le.s32.totalorder 1, %s8
    %p133 = scmp.lt.s32.totalorder %s8, 3
    %p134 = pnand %p132, %p133
    %p135 = pneg %p134
    // Predicated region
    $region25: #{grouped_conv_l1_loss.1} parent=5 // pred_check
      _
    $region26: #{grouped_conv_l1_loss.1} parent=5 // pred_check_branch
      %137 = sbr.rel (%p134) target = $region28
    $region27: #{grouped_conv_l1_loss.1} parent=5 // pred_region
      %s138 = ssub.s32 %s8, 1
      %s139 = smul.u32 2, %s18
      %p140 = scmp.lt.s32.totalorder %s17, 1
      %s141 = scalar_select %p140, %s17, 1
      %p142 = scmp.lt.s32.totalorder %s139, 1
      %s143 = scalar_select %p142, %s139, 1
      %s144 = smul.addr %s141, 4
      %s145 = sadd.s32 %s143, %s144
      %s146 = smul.addr %s145, 8
      %s147 = scalar_lea.vmem %s0, %s146
      %p148 = pneg %p48
      %p149 = pneg %p45
      %p150 = pneg %p69
      %p151 = pneg %p66
      %p152 = pneg %p97
      %p153 = pneg %p94
      %p154 = scmp.lt.s32.totalorder %s17, 1
      %s155 = scalar_select %p154, %s17, 1
      %p156 = scmp.lt.s32.totalorder %s18, 0
      %s157 = scalar_select %p156, %s18, 0
      %s158 = sadd.s32 %s157, %s155
      %s159 = scalar_lea.vmem %s2, %s158
      %s160 = smul.u32 2, %s18
      %p161 = scmp.lt.s32.totalorder %s17, 1
      %s162 = scalar_select %p161, %s17, 1
      %p163 = scmp.lt.s32.totalorder %s160, 1
      %s164 = scalar_select %p163, %s160, 1
      %s165 = smul.addr %s162, 4
      %s166 = sadd.s32 %s164, %s165
      %s167 = smul.addr %s166, 8
      %s168 = scalar_lea.vmem %s0, %s167
      %s169 = smul.u32 2, %s18
      %p170 = scmp.lt.s32.totalorder %s17, 1
      %s171 = scalar_select %p170, %s17, 1
      %p172 = scmp.lt.s32.totalorder %s18, 0
      %s173 = scalar_select %p172, %s18, 0
      %s174 = sadd.s32 %s173, %s171
      %s175 = scalar_lea.vmem %s2, %s174
      %v176 = vld [vmem:[%s168] sm:$0xff]
      %v177 = vld [vmem:[%s168 + $0x8] sm:$0xff]
      %v178 = vld [vmem:[%s168 + $0x10] sm:$0xff]
      %v179 = vld [vmem:[%s168 + $0x18] sm:$0xff]
      %v180 = vld [vmem:[%s1] sm:$0xff]
      %v181 = vld [vmem:[%s1 + $0x8] sm:$0xff]
      %vm182 = vcmask 64512
      %v184 = vsel %vm182, %v180, 0
      %186 = vmatprep.subr.mxu0 %v177
      %187 = vmatpush1.msra.mxu0 %v176
      %188 = vmatprep.subr.mxu0 0.0
      %189 = vmatpush1.msra.mxu0 0.0
      %190 = vmatprep.subr.mxu0 0.0
      %191 = vmatpush1.msra.mxu0 0.0
      %192 = vmatprep.subr.mxu0 0.0
      %193 = vmatpush1.msra.mxu0 0.0
      %194 = vmatprep.subr.mxu0 0.0
      %195 = vmatpush1.msra.mxu0 0.0
      %196 = vmatprep.subr.mxu0 0.0
      %197 = vmatpush1.msra.mxu0 0.0
      %198 = vmatprep.subr.mxu0 0.0
      %199 = vmatpush1.msra.mxu0 0.0
      %200 = vmatprep.subr.mxu0 0.0
      %201 = vmatpush1.msra.mxu0 0.0
      %202 = vmatprep.subr.mxu0 0.0
      %203 = vmatpush1.msra.mxu0 0.0
      %204 = vmatprep.subr.mxu0 0.0
      %205 = vmatpush1.msra.mxu0 0.0
      %206 = vmatprep.subr.mxu0 0.0
      %207 = vmatpush1.msra.mxu0 0.0
      %208 = vmatprep.subr.mxu0 0.0
      %209 = vmatpush1.msra.mxu0 0.0
      %210 = vmatprep.subr.mxu0 0.0
      %211 = vmatpush1.msra.mxu0 0.0
      %212 = vmatprep.subr.mxu0 0.0
      %213 = vmatpush1.msra.mxu0 0.0
      %214 = vmatprep.subr.mxu0 0.0
      %215 = vmatpush1.msra.mxu0 0.0
      %216 = vmatprep.subr.mxu0 0.0
      %217 = vmatpush1.msra.mxu0 0.0
      %218 = vmatprep.subr.mxu0 0.0
      %219 = vmatpush1.msra.mxu0 0.0
      %220 = vmatprep.subr.mxu0 0.0
      %221 = vmatpush1.msra.mxu0 0.0
      %222 = vmatprep.subr.mxu0 0.0
      %223 = vmatpush1.msra.mxu0 0.0
      %224 = vmatprep.subr.mxu0 0.0
      %225 = vmatpush1.msra.mxu0 0.0
      %226 = vmatprep.subr.mxu0 0.0
      %227 = vmatpush1.msra.mxu0 0.0
      %228 = vmatprep.subr.mxu0 0.0
      %229 = vmatpush1.msra.mxu0 0.0
      %230 = vmatprep.subr.mxu0 0.0
      %231 = vmatpush1.msra.mxu0 0.0
      %232 = vmatprep.subr.mxu0 0.0
      %233 = vmatpush1.msra.mxu0 0.0
      %234 = vmatprep.subr.mxu0 0.0
      %235 = vmatpush1.msra.mxu0 0.0
      %236 = vmatprep.subr.mxu0 0.0
      %237 = vmatpush1.msra.mxu0 0.0
      %238 = vmatprep.subr.mxu0 0.0
      %239 = vmatpush1.msra.mxu0 0.0
      %240 = vmatprep.subr.mxu0 0.0
      %241 = vmatpush1.msra.mxu0 0.0
      %242 = vmatprep.subr.mxu0 0.0
      %243 = vmatpush1.msra.mxu0 0.0
      %244 = vmatprep.subr.mxu0 0.0
      %245 = vmatpush1.msra.mxu0 0.0
      %246 = vmatprep.subr.mxu0 0.0
      %247 = vmatpush1.msra.mxu0 0.0
      %248 = vmatprep.subr.mxu0 0.0
      %249 = vmatpush1.msra.mxu0 0.0
      %250 = vmatprep.mubr.f32.mxu0 0.0
      %251 = vmatmul.mubr.f32.gmra.mrb[0].mxu0 %v184
      %v252 = vpop.f32.mrb[0].mxu0
      %v253 = vadd.f32 0.0, %v252
      %v254 = vpop.f32.mrb[0].mxu0
      %v255 = vadd.f32 0.0, %v254
      %256 = vdwg.mxu0
      %v258 = vsel %vm182, %v181, 0
      %260 = vmatprep.subr.mxu0 %v179
      %261 = vmatpush1.msra.mxu0 %v178
      %262 = vmatprep.subr.mxu0 0.0
      %263 = vmatpush1.msra.mxu0 0.0
      %264 = vmatprep.subr.mxu0 0.0
      %265 = vmatpush1.msra.mxu0 0.0
      %266 = vmatprep.subr.mxu0 0.0
      %267 = vmatpush1.msra.mxu0 0.0
      %268 = vmatprep.subr.mxu0 0.0
      %269 = vmatpush1.msra.mxu0 0.0
      %270 = vmatprep.subr.mxu0 0.0
      %271 = vmatpush1.msra.mxu0 0.0
      %272 = vmatprep.subr.mxu0 0.0
      %273 = vmatpush1.msra.mxu0 0.0
      %274 = vmatprep.subr.mxu0 0.0
      %275 = vmatpush1.msra.mxu0 0.0
      %276 = vmatprep.subr.mxu0 0.0
      %277 = vmatpush1.msra.mxu0 0.0
      %278 = vmatprep.subr.mxu0 0.0
      %279 = vmatpush1.msra.mxu0 0.0
      %280 = vmatprep.subr.mxu0 0.0
      %281 = vmatpush1.msra.mxu0 0.0
      %282 = vmatprep.subr.mxu0 0.0
      %283 = vmatpush1.msra.mxu0 0.0
      %284 = vmatprep.subr.mxu0 0.0
      %285 = vmatpush1.msra.mxu0 0.0
      %286 = vmatprep.subr.mxu0 0.0
      %287 = vmatpush1.msra.mxu0 0.0
      %288 = vmatprep.subr.mxu0 0.0
      %289 = vmatpush1.msra.mxu0 0.0
      %290 = vmatprep.subr.mxu0 0.0
      %291 = vmatpush1.msra.mxu0 0.0
      %292 = vmatprep.subr.mxu0 0.0
      %293 = vmatpush1.msra.mxu0 0.0
      %294 = vmatprep.subr.mxu0 0.0
      %295 = vmatpush1.msra.mxu0 0.0
      %296 = vmatprep.subr.mxu0 0.0
      %297 = vmatpush1.msra.mxu0 0.0
      %298 = vmatprep.subr.mxu0 0.0
      %299 = vmatpush1.msra.mxu0 0.0
      %300 = vmatprep.subr.mxu0 0.0
      %301 = vmatpush1.msra.mxu0 0.0
      %302 = vmatprep.subr.mxu0 0.0
      %303 = vmatpush1.msra.mxu0 0.0
      %304 = vmatprep.subr.mxu0 0.0
      %305 = vmatpush1.msra.mxu0 0.0
      %306 = vmatprep.subr.mxu0 0.0
      %307 = vmatpush1.msra.mxu0 0.0
      %308 = vmatprep.subr.mxu0 0.0
      %309 = vmatpush1.msra.mxu0 0.0
      %310 = vmatprep.subr.mxu0 0.0
      %311 = vmatpush1.msra.mxu0 0.0
      %312 = vmatprep.subr.mxu0 0.0
      %313 = vmatpush1.msra.mxu0 0.0
      %314 = vmatprep.subr.mxu0 0.0
      %315 = vmatpush1.msra.mxu0 0.0
      %316 = vmatprep.subr.mxu0 0.0
      %317 = vmatpush1.msra.mxu0 0.0
      %318 = vmatprep.subr.mxu0 0.0
      %319 = vmatpush1.msra.mxu0 0.0
      %320 = vmatprep.subr.mxu0 0.0
      %321 = vmatpush1.msra.mxu0 0.0
      %322 = vmatprep.subr.mxu0 0.0
      %323 = vmatpush1.msra.mxu0 0.0
      %324 = vmatprep.mubr.f32.mxu0 0.0
      %325 = vmatmul.mubr.f32.gmra.mrb[0].mxu0 %v258
      %v326 = vpop.f32.mrb[0].mxu0
      %v327 = vadd.f32 0.0, %v326
      %v328 = vpop.f32.mrb[0].mxu0
      %v329 = vadd.f32 0.0, %v328
      %330 = vdwg.mxu0
      %v331 = vsub.f32 %v176, %v253
      %v332 = vsub.f32 %v177, %v255
      %v333 = vsub.f32 %v178, %v327
      %v334 = vsub.f32 %v179, %v329
      %v335 = vand.u32 2147483647, %v331
      %v336 = vand.u32 2147483647, %v332
      %v337 = vand.u32 2147483647, %v333
      %v338 = vand.u32 2147483647, %v334
      %v339 = vadd.f32 %v335, %v337
      %v340 = vadd.f32 %v336, %v338
      %v341 = vadd.f32 %v339, %v340
      %342 = vadd.xlane.f32.xlu0 %v341
      %v343 = vpop.xlane.xlu0 %342
      %v344 = vrot.slane %v343, 4
      %v345 = vadd.f32 %v343, %v344
      %v346 = vrot.slane %v345, 2
      %v347 = vadd.f32 %v345, %v346
      %v348 = vrot.slane %v347, 1
      %v349 = vadd.f32 %v347, %v348
      %s350 = vtos %v349
      %v351 = vstv %s350
      %vm352 = vcmask 0
      %353 = vst.msk [vmem:[%s175] sm:$0x1] %vm352, %v351
      %p354 = scmp.lt.s32.totalorder %s17, 1
      %s355 = scalar_select %p354, %s17, 1
      %p356 = scmp.lt.s32.totalorder %s18, 0
      %s357 = scalar_select %p356, %s18, 0
      %s358 = sadd.s32 %s357, %s355
      %s359 = scalar_lea.vmem %s2, %s358
      // Predicated region
      $region29: #{grouped_conv_l1_loss.1} parent=27 // pred_check
        %p360 = pneg %p94
      $region30: #{grouped_conv_l1_loss.1} parent=27 // pred_check_branch
        %362 = sbr.rel (%p360) target = $region32
      $region31: #{grouped_conv_l1_loss.1} parent=27 // pred_region
        _
      $region32: #{grouped_conv_l1_loss.1} parent=27 // pred_fallthru
        _
    $region28: #{grouped_conv_l1_loss.1} parent=5 // pred_fallthru
      _
    %p363 = scmp.le.s32.totalorder 2, %s8
    // Predicated region
    $region33: #{grouped_conv_l1_loss.1} parent=5 // pred_check
      %p364 = pneg %p363
    $region34: #{grouped_conv_l1_loss.1} parent=5 // pred_check_branch
      %366 = sbr.rel (%p364) target = $region36
    $region35: #{grouped_conv_l1_loss.1} parent=5 // pred_region
      %s367 = ssub.s32 %s8, 2
      // Predicated region
      $region37: #{grouped_conv_l1_loss.1} parent=35 // pred_check
        %p368 = pneg %p100
      $region38: #{grouped_conv_l1_loss.1} parent=35 // pred_check_branch
        %370 = sbr.rel (%p368) target = $region40
      $region39: #{grouped_conv_l1_loss.1} parent=35 // pred_region
        %p371 = scmp.lt.s32.totalorder %s19, 1
        %s372 = scalar_select %p371, %s19, 1
        %p373 = scmp.lt.s32.totalorder %s20, 0
        %s374 = scalar_select %p373, %s20, 0
        %s375 = sadd.s32 %s374, %s372
        %s376 = scalar_lea.vmem %s2, %s375
      $region40: #{grouped_conv_l1_loss.1} parent=35 // pred_fallthru
        _
    $region36: #{grouped_conv_l1_loss.1} parent=5 // pred_fallthru
      _
  $region6: #{grouped_conv_l1_loss.1} parent=0 // loop_footer
    %s12 = sadd.s32 1, %s8
  $region7: #{grouped_conv_l1_loss.1} parent=0 // loop_footer_branch
    %7 = sbr.rel target = $region3
  $region8: #{grouped_conv_l1_loss.1} parent=0 // loop_exit
    _

</llo_original>
